<compile_context>
chip_gen: v5e
topology: v5e:2x2
jax: 0.10.0
libtpu: 0.0.40
codegen_flags: <defaults>
</compile_context>

<pallas_src>
import functools

import jax
import jax.numpy as jnp
from jax.experimental import pallas as pl
from jax.experimental.pallas import tpu as pltpu


_K_TILE = 2048          # unit K tile used when the reduction must be split
_TILE_M = 256           # max rows per output tile


def _round_up(x, m):
    return ((x + m - 1) // m) * m


def _device_policy():
    """Per-generation tiling / VMEM policy (conservative when unknown)."""
    kind = ""
    try:
        kind = (jax.devices()[0].device_kind or "").lower()
    except Exception:
        pass
    if "v7" in kind:
        # 64 MiB VMEM per TensorCore, 2 TCs per chip.
        return dict(tile_n_max=512, max_k_block=2048,
                    vmem_cap=32 * 2**20, split_for_cores=True)
    if "v5" in kind or "v6" in kind:
        # 128 MiB VMEM, 1 TC per chip -> larger K/N tiles, fewer grid steps.
        return dict(tile_n_max=1024, max_k_block=4096,
                    vmem_cap=96 * 2**20, split_for_cores=False)
    return dict(tile_n_max=512, max_k_block=2048,
                vmem_cap=32 * 2**20, split_for_cores=False)


# ----------------------------------------------------------------------------
# One-time parameter packing (hoisted out of the per-call path)
# ----------------------------------------------------------------------------
def prepare_complex_to_real_params(w_r, w_i, bias, *, use_bf16=False):
    """Returns (w_stacked, bias_row, out_features).

    w_stacked : (K_pad, N_pad) with rows interleaved so that
                W[2k, :] = w_r[:, k] and W[2k+1, :] = w_i[:, k], matching the
                [r0, i0, r1, i1, ...] activation layout.
    bias_row  : (1, N_pad) float32.
    """
    w_r = jnp.asarray(w_r, jnp.float32)
    w_i = jnp.asarray(w_i, jnp.float32)
    out_features, in_features = w_r.shape

    w = jnp.stack([w_r.T, w_i.T], axis=1).reshape(2 * in_features, out_features)
    b = jnp.asarray(bias, jnp.float32).reshape(1, out_features)

    # Lane-dense N padding (avoids masked vst.msk partial stores); pad to a
    # multiple of 256 once N > 256 so large-N tiling never needs 128-wide tiles.
    n_pad_to = 128 if out_features <= 256 else 256
    n_padded = _round_up(out_features, n_pad_to)
    if n_padded != out_features:
        w = jnp.pad(w, ((0, 0), (0, n_padded - out_features)))
        b = jnp.pad(b, ((0, 0), (0, n_padded - out_features)))

    # If the reduction will be tiled, zero-pad K here (weights only, once) so
    # the kernel never reduces over unspecified data.
    k = 2 * in_features
    if k > _K_TILE:
        k_padded = _round_up(k, _K_TILE)
        if k_padded != k:
            w = jnp.pad(w, ((0, k_padded - k), (0, 0)))

    compute_dtype = jnp.bfloat16 if use_bf16 else jnp.float32
    return w.astype(compute_dtype), b, out_features


# ----------------------------------------------------------------------------
# Kernels
# ----------------------------------------------------------------------------
def _c2r_kernel_whole_k(x_ref, w_ref, b_ref, o_ref):
    # Whole reduction in one block: single MXU dot + bias, no scratch.
    o_ref[...] = (
        jnp.dot(x_ref[...], w_ref[...], preferred_element_type=jnp.float32)
        + b_ref[...]
    ).astype(o_ref.dtype)


def _c2r_kernel_tiled_k(x_ref, w_ref, b_ref, o_ref):
    # K tiled over grid axis 2 (innermost, "arbitrary"): the f32 output tile
    # stays VMEM-resident across the sweep and doubles as the accumulator.
    k = pl.program_id(2)

    @pl.when(k == 0)
    def _():
        o_ref[...] = jnp.broadcast_to(b_ref[...], o_ref.shape).astype(o_ref.dtype)

    o_ref[...] += jnp.dot(x_ref[...], w_ref[...],
                          preferred_element_type=jnp.float32)


# ----------------------------------------------------------------------------
# Forward
# ----------------------------------------------------------------------------
@functools.partial(jax.jit, static_argnames=("out_features",))
def complex_to_real(x_complex, w_stacked, bias_row, *, out_features):
    """out = x.real @ w_r^T + x.imag @ w_i^T + bias, as one fused GEMM."""
    in_features = x_complex.shape[-1]
    lead_shape = x_complex.shape[:-1]
    compute_dtype = w_stacked.dtype
    k_padded, n_padded = w_stacked.shape

    # Interleaved [r0,i0,r1,i1,...] activation layout: matches the raw
    # complex64 memory order and the row-interleaved weight, so under jit this
    # lowers to one fused pass over x (no separate real/imag/concat copies).
    xr = jnp.real(x_complex).astype(compute_dtype)
    xi = jnp.imag(x_complex).astype(compute_dtype)
    xf = jnp.stack([xr, xi], axis=-1).reshape(-1, 2 * in_features)
    M = xf.shape[0]
    K = 2 * in_features
    if k_padded != K:                      # only when the reduction is tiled
        xf = jnp.pad(xf, ((0, 0), (0, k_padded - K)))

    policy = _device_policy()
    m_align = 16 if compute_dtype == jnp.bfloat16 else 8

    # --- M tiling: ragged last block is fine (garbage rows masked on store) ---
    tm = min(_TILE_M, _round_up(M, m_align))

    # --- N tiling: n_padded is a multiple of 128 (<=256) or 256 (>256) ---
    if n_padded <= policy["tile_n_max"]:
        tn = n_padded
    else:
        tn = 256
        while tn * 2 <= policy["tile_n_max"] and n_padded % (tn * 2) == 0:
            tn *= 2

    # --- K tiling: whole-K whenever it fits the per-generation block budget ---
    if k_padded <= policy["max_k_block"]:
        tk, k_blocks = k_padded, 1
    else:
        tk = _K_TILE
        while tk * 2 <= policy["max_k_block"] and k_padded % (tk * 2) == 0:
            tk *= 2
        k_blocks = k_padded // tk

    # --- v7x megacore: make sure both TensorCores get at least one block ---
    if policy["split_for_cores"]:
        if (pl.cdiv(M, tm) * (n_padded // tn) < 2) and M >= 2 * m_align:
            tm = _round_up(pl.cdiv(M, 2), m_align)

    grid_m = pl.cdiv(M, tm)
    grid_n = n_padded // tn

    # --- VMEM budget from the actual double-buffered footprint + headroom ---
    itemsize = jnp.dtype(compute_dtype).itemsize
    footprint = (2 * tm * tk * itemsize       # x blocks (double buffered)
                 + 2 * tk * tn * itemsize     # w blocks
                 + 2 * tn * 4                 # bias block
                 + 2 * tm * tn * 4)           # f32 output blocks (accumulator)
    vmem_limit = int(min(max(int(footprint * 1.3), 8 * 2**20),
                         policy["vmem_cap"]))

    if k_blocks == 1:
        grid = (grid_m, grid_n)
        in_specs = [
            pl.BlockSpec((tm, tk), lambda i, j: (i, 0)),
            pl.BlockSpec((tk, tn), lambda i, j: (0, j)),
            pl.BlockSpec((1, tn), lambda i, j: (0, j)),
        ]
        out_spec = pl.BlockSpec((tm, tn), lambda i, j: (i, j))
        dims = ("parallel", "parallel")
        kernel = _c2r_kernel_whole_k
    else:
        grid = (grid_m, grid_n, k_blocks)
        in_specs = [
            pl.BlockSpec((tm, tk), lambda i, j, k: (i, k)),
            pl.BlockSpec((tk, tn), lambda i, j, k: (k, j)),
            pl.BlockSpec((1, tn), lambda i, j, k: (0, j)),
        ]
        out_spec = pl.BlockSpec((tm, tn), lambda i, j, k: (i, j))
        dims = ("parallel", "parallel", "arbitrary")
        kernel = _c2r_kernel_tiled_k

    out = pl.pallas_call(
        kernel,
        out_shape=jax.ShapeDtypeStruct((M, n_padded), jnp.float32),
        grid_spec=pltpu.PrefetchScalarGridSpec(
            num_scalar_prefetch=0,
            grid=grid,
            in_specs=in_specs,
            out_specs=out_spec,
        ),
        compiler_params=pltpu.CompilerParams(
            dimension_semantics=dims,
            vmem_limit_bytes=vmem_limit,
        ),
    )(xf, w_stacked, bias_row)

    if n_padded != out_features:
        out = out[:, :out_features]
    return out.reshape(*lead_shape, out_features)


# ----------------------------------------------------------------------------
# Self-test
# ----------------------------------------------------------------------------
if __name__ == "__main__":
    key = jax.random.PRNGKey(0)
    k1, k2, k3, k4, k5 = jax.random.split(key, 5)

    batch, seq, in_features, out_features = 2, 8, 32, 32

    # PyTorch Linear weight layout: (out_features, in_features)
    w_r = jax.random.normal(k1, (out_features, in_features), jnp.float32) * 0.1
    w_i = jax.random.normal(k2, (out_features, in_features), jnp.float32) * 0.1
    bias = jax.random.normal(k3, (out_features,), jnp.float32) * 0.01

    x_real = jax.random.normal(k4, (batch, seq, in_features), jnp.float32)
    x_imag = jax.random.normal(k5, (batch, seq, in_features), jnp.float32)
    x = (x_real + 1j * x_imag).astype(jnp.complex64)

    ref = x_real @ w_r.T + x_imag @ w_i.T + bias

    # f32 path (matches the PyTorch module numerics exactly).
    w_f32, b_row, n_out = prepare_complex_to_real_params(w_r, w_i, bias)
    out = jax.block_until_ready(
        complex_to_real(x, w_f32, b_row, out_features=n_out))
    assert out.shape == (batch, seq, out_features)
    assert out.dtype == jnp.float32
    assert jnp.allclose(out, ref, atol=1e-5, rtol=1e-5), "f32 path mismatch"

    # bf16-operand path (f32 accumulation) - recommended on v6e/v7x, also a
    # win on HBM-bound v5e.
    w_bf16, b_row2, n_out2 = prepare_complex_to_real_params(
        w_r, w_i, bias, use_bf16=True)
    out_bf16 = jax.block_until_ready(
        complex_to_real(x, w_bf16, b_row2, out_features=n_out2))
    assert jnp.allclose(out_bf16, ref, atol=5e-2, rtol=5e-2), "bf16 path mismatch"

    print("KERNEL_OK")
</pallas_src>

<mosaic_0001>
module attributes {stable_mosaic.version = 11 : i64} {
  func.func @_c2r_kernel_whole_k(%arg0: i32, %arg1: i32, %arg2: memref<16x64xf32, #tpu.memory_space<vmem>>, %arg3: memref<64x128xf32, #tpu.memory_space<vmem>>, %arg4: memref<1x128xf32, #tpu.memory_space<vmem>>, %arg5: memref<16x128xf32, #tpu.memory_space<vmem>>) attributes {dimension_semantics = [#tpu.dimension_semantics<parallel>, #tpu.dimension_semantics<parallel>], iteration_bounds = array<i64: 1, 1>, scalar_prefetch = 0 : i64, scratch_operands = 0 : i64, tpu.core_type = #tpu.core_type<tc>, window_params = [{transform_indices = @transform_0, window_bounds = array<i64: 16, 64>}, {transform_indices = @transform_1, window_bounds = array<i64: 64, 128>}, {transform_indices = @transform_2, window_bounds = array<i64: 1, 128>}, {transform_indices = @transform_3, window_bounds = array<i64: 16, 128>}]} {
    %c0 = arith.constant 0 : index
    %c0_0 = arith.constant 0 : index
    %0 = vector.load %arg2[%c0, %c0_0] : memref<16x64xf32, #tpu.memory_space<vmem>>, vector<16x64xf32>
    %c0_1 = arith.constant 0 : index
    %c0_2 = arith.constant 0 : index
    %1 = vector.load %arg3[%c0_1, %c0_2] : memref<64x128xf32, #tpu.memory_space<vmem>>, vector<64x128xf32>
    %cst = arith.constant dense<0.000000e+00> : vector<16x128xf32>
    %2 = tpu.matmul %0, %1, %cst {dimension_numbers = #tpu.dot_dimension_numbers<[1], [0], [0], [1], [0, 0, 1, 1], [], []>} : vector<16x64xf32>, vector<64x128xf32>, vector<16x128xf32> -> vector<16x128xf32>
    %c0_3 = arith.constant 0 : index
    %c0_4 = arith.constant 0 : index
    %3 = vector.load %arg4[%c0_3, %c0_4] : memref<1x128xf32, #tpu.memory_space<vmem>>, vector<1x128xf32>
    %4 = vector.broadcast %3 : vector<1x128xf32> to vector<16x128xf32>
    %5 = arith.addf %2, %4 : vector<16x128xf32>
    %c0_5 = arith.constant 0 : index
    %c0_6 = arith.constant 0 : index
    %6 = vector.load %arg5[%c0_5, %c0_6] : memref<16x128xf32, #tpu.memory_space<vmem>>, vector<16x128xf32>
    tpu.vector_store %arg5[%c0_5, %c0_6], %5 {strides = array<i32>} : memref<16x128xf32, #tpu.memory_space<vmem>>, vector<16x128xf32>,
    return
  }
  func.func @transform_0(%arg0: i32, %arg1: i32) -> (i32, i32) {
    %c0_i32 = arith.constant 0 : i32
    %c0_i32_0 = arith.constant 0 : i32
    return %arg0, %c0_i32 : i32, i32
  }
  func.func @transform_1(%arg0: i32, %arg1: i32) -> (i32, i32) {
    %c0_i32 = arith.constant 0 : i32
    %c0_i32_0 = arith.constant 0 : i32
    return %c0_i32, %arg1 : i32, i32
  }
  func.func @transform_2(%arg0: i32, %arg1: i32) -> (i32, i32) {
    %c0_i32 = arith.constant 0 : i32
    %c0_i32_0 = arith.constant 0 : i32
    return %c0_i32, %arg1 : i32, i32
  }
  func.func @transform_3(%arg0: i32, %arg1: i32) -> (i32, i32) {
    %c0_i32 = arith.constant 0 : i32
    return %arg0, %arg1 : i32, i32
  }
}

</mosaic_0001>

<llo_original>
// kernel: custom-call
$region0: #{custom-call}
  %s0 = inlined_call_operand.hbm [shape: c64[2,8,32], index: 0, kind: input, shape index: {}]
  %s1 = inlined_call_operand.vmem [shape: f32[2,8,32], index: 1, kind: output, shape index: {}]
  $region1: #{custom-call} parent=0
    #allocation0 [shape = 's32[1]{0}', space=sflag, size = 0x4, scoped, tag = 'scoped memory for custom-call']
    %2 = vsyncpa [#allocation0], 0
    %s4 = sshll.u32 %s0, 4
    %s5 = int_to_ptr.hbm [resolvable:$true] %s4
    %s6 = sshll.u32 %s1, 4
    %s7 = int_to_ptr.vmem [resolvable:$true] %s6
    %9 = dma.hbm_to_vmem [thread:$0]  %s5, 256, %s7, [#allocation0]
    %11 = dma.done [#allocation0], 256
    %12 = vsyncpa [#allocation0], 1

// kernel: custom-call.1
$region0: #{custom-call.1}
  %s0 = inlined_call_operand.hbm [shape: c64[2,8,32], index: 0, kind: input, shape index: {}]
  %s1 = inlined_call_operand.vmem [shape: f32[2,8,32], index: 1, kind: output, shape index: {}]
  %s2 = scalar_lea.hbm %s0, 16
  $region1: #{custom-call.1} parent=0
    #allocation0 [shape = 's32[1]{0}', space=sflag, size = 0x4, scoped, tag = 'scoped memory for custom-call.1']
    %3 = vsyncpa [#allocation0], 0
    %s5 = sshll.u32 %s2, 4
    %s6 = int_to_ptr.hbm [resolvable:$true] %s5
    %s7 = sshll.u32 %s1, 4
    %s8 = int_to_ptr.vmem [resolvable:$true] %s7
    %10 = dma.hbm_to_vmem [thread:$0]  %s6, 256, %s8, [#allocation0]
    %12 = dma.done [#allocation0], 256
    %13 = vsyncpa [#allocation0], 1

// kernel: complex_to_real.1
$region0: #{complex_to_real.1}
  #allocation0 [shape = 'u32[]', space=smem, size = 0x4, offset = 0x4, fixed_abs, tag = 'smem constant byte address 0x4 - core index']
  #allocation1 [shape = 'u32[72,128]{1,0:T(1,128)}', space=vmem, size = 0x9000, scoped, tag = 'internal scratch']
  %s0 = inlined_call_operand.vmem [shape: f32[16,64], index: 0, kind: input, shape index: {}]
  %s1 = inlined_call_operand.vmem [shape: f32[64,128], index: 1, kind: input, shape index: {}]
  %s2 = inlined_call_operand.vmem [shape: f32[1,128], index: 2, kind: input, shape index: {}]
  %s3 = inlined_call_operand.vmem [shape: f32[16,128], index: 3, kind: output, shape index: {}]
  %s4 = sld [smem:[#allocation0]]
  $region22: #{complex_to_real.1} parent=0
    _
  %s6 = ssub.s32 1, %s4
  %s7 = scalar_select 0, %s6, %s4
  // Predicated region
  $region2: #{complex_to_real.1} parent=0 // pred_check
    _
  $region3: #{complex_to_real.1} parent=0 // pred_check_branch
    %9 = sbr.rel (0) target = $region5
  $region4: #{complex_to_real.1} parent=0 // pred_region
    _
  $region5: #{complex_to_real.1} parent=0 // pred_fallthru
    _
  // Predicated region
  $region6: #{complex_to_real.1} parent=0 // pred_check
    _
  $region7: #{complex_to_real.1} parent=0 // pred_check_branch
    %11 = sbr.rel (0) target = $region9
  $region8: #{complex_to_real.1} parent=0 // pred_region
    _
  $region9: #{complex_to_real.1} parent=0 // pred_fallthru
    _
  // Predicated region
  $region10: #{complex_to_real.1} parent=0 // pred_check
    _
  $region11: #{complex_to_real.1} parent=0 // pred_check_branch
    %13 = sbr.rel (0) target = $region13
  $region12: #{complex_to_real.1} parent=0 // pred_region
    _
  $region13: #{complex_to_real.1} parent=0 // pred_fallthru
    _
  %v14 = vld [vmem:[%s0] sm:$0xff]
  %v15 = vld [vmem:[%s0 + $0x8] sm:$0xff]
  %v16 = vld [vmem:[%s1] sm:$0xff]
  %v17 = vld [vmem:[%s1 + $0x8] sm:$0xff]
  %v18 = vld [vmem:[%s1 + $0x10] sm:$0xff]
  %v19 = vld [vmem:[%s1 + $0x18] sm:$0xff]
  %v20 = vld [vmem:[%s1 + $0x20] sm:$0xff]
  %v21 = vld [vmem:[%s1 + $0x28] sm:$0xff]
  %v22 = vld [vmem:[%s1 + $0x30] sm:$0xff]
  %v23 = vld [vmem:[%s1 + $0x38] sm:$0xff]
  %v24 = vld [vmem:[%s2] sm:$0x1]
  %v26 = vperm.slane %v24, 0
  %vm28 = vcmask 523264
  %v30 = vsel %vm28, %v14, 0
  %v33 = vsel %vm28, %v15, 0
  %35 = vmatpush.msra.mxu0 0.0
  %36 = vmatpush.msra.mxu0 0.0
  %37 = vmatpush.msra.mxu0 0.0
  %38 = vmatpush.msra.mxu0 0.0
  %39 = vmatpush.msra.mxu0 0.0
  %40 = vmatpush.msra.mxu0 0.0
  %41 = vmatpush.msra.mxu0 0.0
  %42 = vmatpush.msra.mxu0 0.0
  %43 = vmatpush.msra.mxu0 %v23
  %44 = vmatpush.msra.mxu0 %v22
  %45 = vmatpush.msra.mxu0 %v21
  %46 = vmatpush.msra.mxu0 %v20
  %47 = vmatpush.msra.mxu0 %v19
  %48 = vmatpush.msra.mxu0 %v18
  %49 = vmatpush.msra.mxu0 %v17
  %50 = vmatpush.msra.mxu0 %v16
  %51 = vmatmul.f32.gmra.mxu0 %v30
  %v52 = vpop.f32.mrf.mxu0
  %v53 = vadd.f32 %v26, %v52
  %54 = vmatmul.f32.gmra.mxu0 %v33
  %v55 = vpop.f32.mrf.mxu0
  %v56 = vadd.f32 %v26, %v55
  %57 = vdwg.mxu0
  %58 = vst [vmem:[%s3] sm:$0xff] %v53
  %59 = vst [vmem:[%s3 + $0x8] sm:$0xff] %v56
  // Predicated region
  $region14: #{complex_to_real.1} parent=0 // pred_check
    _
  $region15: #{complex_to_real.1} parent=0 // pred_check_branch
    %61 = sbr.rel (0) target = $region17
  $region16: #{complex_to_real.1} parent=0 // pred_region
    _
  $region17: #{complex_to_real.1} parent=0 // pred_fallthru
    _
  // Predicated region
  $region18: #{complex_to_real.1} parent=0 // pred_check
    _
  $region19: #{complex_to_real.1} parent=0 // pred_check_branch
    %63 = sbr.rel (0) target = $region21
  $region20: #{complex_to_real.1} parent=0 // pred_region
    _
  $region21: #{complex_to_real.1} parent=0 // pred_fallthru
    _

</llo_original>
